<compile_context>
chip_gen: v7x
topology: tpu7x:2x2x1
jax: 0.10.0
libtpu: 0.0.40
codegen_flags: <defaults>
</compile_context>

<pallas_src>
import functools
import math

import jax
import jax.numpy as jnp
from jax.experimental import pallas as pl
from jax.experimental.pallas import tpu as pltpu


def _round_up(v, m):
    return ((v + m - 1) // m) * m


def _pick_vmem_limit():
    """Generation-aware scoped-VMEM limit (~48 MiB on v7x, ~96 MiB on v5e/v6e)."""
    cap = 64 << 20  # assume the smallest (v7x) if the query fails
    try:
        info = pltpu.get_tpu_info()
        cap = int(getattr(info, "vmem_capacity_bytes", cap))
    except Exception:
        pass
    return int(min(96 << 20, max(44 << 20, (cap * 3) // 4)))


def _choose_tile_n(n, d_pad, k, io_itemsize, mxu_itemsize, vmem_limit, row_align,
                   max_tile_n=None):
    """Largest batch tile (multiple of row_align) whose working set fits VMEM."""
    # Resident fused weight: constant (0, 0) index_map -> revisited, count once.
    w_bytes = k * d_pad * d_pad * mxu_itemsize
    # Per batch row: x tile (triple-buffered) + y tile (double-buffered) in the
    # I/O dtype, plus the live f32 working set (x, sin/cos temps, accumulator)
    # and one psi slab in the MXU dtype.
    per_row = (3 + 2) * d_pad * io_itemsize + 8 * d_pad * 4 + d_pad * mxu_itemsize
    budget = vmem_limit - w_bytes - (4 << 20)      # headroom for misc scratch
    tile = max(row_align, min(budget // per_row, 2048))
    tile = (tile // row_align) * row_align
    # Keep >= 2 grid blocks for non-trivial batches so the "parallel" grid axis
    # can feed both v7x TensorCores (one extra grid step is noise on v5e/v6e).
    if n > 2 * 256:
        tile = min(tile, _round_up(-(-n // 2), row_align))
    if max_tile_n is not None:
        tile = min(tile, max(row_align, (max_tile_n // row_align) * row_align))
    if tile >= n:
        return _round_up(max(n, 1), row_align)     # single block covers the batch
    return max(row_align, tile)


def notears_sobolev_kernel(x_ref, w_ref, y_ref, l2_ref, *, k, d_pad, n_valid, inv_n):
    """x_ref: (blk, d_pad); w_ref: (k*d_pad, d_pad) fused/pre-transposed
    (w_pos - w_neg); y_ref: (blk, d_pad); l2_ref: (1, 1, 128) per-block partial."""
    blk = x_ref.shape[0]
    x = x_ref[...].astype(jnp.float32)

    # Sobolev basis via the odd-harmonic recurrence:
    #   mu_kk = 2 / ((2kk+1) pi)  =>  x / mu_kk = (2kk+1) * theta,  theta = pi*x/2
    #   sin((m+2) theta) = 2 cos(2 theta) sin(m theta) - sin((m-2) theta)
    # -> 2 transcendentals per element instead of k full sin evaluations.
    theta = x * (math.pi / 2.0)
    s1 = jnp.sin(theta)
    two_c2 = 2.0 * jnp.cos(theta + theta)
    mxu_dtype = w_ref.dtype

    s_cur, s_prev = s1, -s1                       # sin(+theta), sin(-theta)
    acc = None
    for kk in range(k):                           # k is small -> static unroll
        mu = 2.0 / ((2 * kk + 1) * math.pi)
        psi_kk = (mu * s_cur).astype(mxu_dtype)   # psi slab kk (MXU operand)
        contrib = jnp.dot(psi_kk, w_ref[kk * d_pad:(kk + 1) * d_pad, :],
                          preferred_element_type=jnp.float32)
        acc = contrib if acc is None else acc + contrib
        if kk + 1 < k:
            s_cur, s_prev = two_c2 * s_cur - s_prev, s_cur

    y_ref[...] = acc.astype(y_ref.dtype)

    # l2 partial (already scaled by 1/n).  Rows beyond the valid batch in the
    # last partial block are masked with a select so garbage/NaN cannot leak.
    rows_valid = n_valid - pl.program_id(0) * blk
    row_ids = jax.lax.broadcasted_iota(jnp.int32, (blk, d_pad), 0)
    sq = jnp.where(row_ids < rows_valid, acc * acc, 0.0)
    l2_ref[...] = jnp.broadcast_to(jnp.sum(sq) * inv_n,
                                   l2_ref.shape).astype(l2_ref.dtype)


def notears_sobolev_forward(x, w_pos, w_neg, k, *, use_bf16_mxu=True, max_tile_n=None):
    """Returns (y, l2_reg_store) exactly like NotearsSobolev.forward."""
    n, d = x.shape
    assert w_pos.shape == (d, d * k) and w_neg.shape == (d, d * k)

    d_pad = _round_up(d, 128)
    vmem_limit = _pick_vmem_limit()

    # bf16 MXU operands with f32 accumulation by default (3-4x MXU phase on
    # v6e/v7x, half the resident weight); flip use_bf16_mxu=False for strict
    # f32 numerics.  Forced to bf16 if the resident f32 weight would not fit.
    mxu_dtype = jnp.bfloat16 if (use_bf16_mxu or x.dtype == jnp.bfloat16) else jnp.float32
    if k * d_pad * d_pad * jnp.dtype(mxu_dtype).itemsize > vmem_limit // 2:
        mxu_dtype = jnp.bfloat16
    # TODO(synk): if k*d_pad*d_pad*2 still exceeds ~vmem_limit//2 (very large d),
    # add a second "parallel" grid axis tiling the output columns of w_fused / y.

    io_itemsize = jnp.dtype(x.dtype).itemsize
    row_align = 32 if io_itemsize == 1 else (16 if io_itemsize == 2 else 8)
    tile_n = _choose_tile_n(n, d_pad, k, io_itemsize,
                            jnp.dtype(mxu_dtype).itemsize,
                            vmem_limit, row_align, max_tile_n)
    num_blocks = -(-n // tile_n)

    # Column pad only (sin(0)=0 -> exact zero contribution).  Batch rows are NOT
    # padded: the grid is cdiv(n, tile_n) and the last partial block is handled
    # by the in-kernel l2 mask + partial-block writeback.
    # TODO(synk): for d % 128 != 0 the x pad / y slice are each one extra HBM
    # pass; a consumer accepting the padded (n, d_pad) y would make the slice free.
    x_p = jnp.pad(x, ((0, 0), (0, d_pad - d))) if d != d_pad else x

    # Fold the two linears (exact for the forward) and pre-transpose+fuse:
    # W_fused[kk*d_pad + j, i] = (w_pos - w_neg)[i, j*k + kk], zero in padding.
    # TODO(synk): if a custom VJP is added later, split dW back as +dW / -dW.
    w_diff = (w_pos - w_neg).astype(jnp.float32).reshape(d, d, k)   # [i, j, kk]
    w_t = jnp.transpose(w_diff, (2, 1, 0))                          # [kk, j, i]
    w_t = jnp.pad(w_t, ((0, 0), (0, d_pad - d), (0, d_pad - d)))
    w_fused = w_t.reshape(k * d_pad, d_pad).astype(mxu_dtype)

    kernel = functools.partial(notears_sobolev_kernel, k=k, d_pad=d_pad,
                               n_valid=n, inv_n=1.0 / max(n, 1))

    x_spec = pl.BlockSpec((tile_n, d_pad), lambda i: (i, 0))
    if d_pad <= 256 and num_blocks >= 3:
        # Small blocks in the mem-bound regime: deepen the x pipeline.
        x_spec = pl.BlockSpec((tile_n, d_pad), lambda i: (i, 0),
                              pipeline_mode=pl.Buffered(3))

    cost = pl.CostEstimate(
        flops=2 * n * k * d_pad * d_pad,
        transcendentals=2 * n * d_pad,
        bytes_accessed=(2 * n * d_pad * io_itemsize
                        + k * d_pad * d_pad * jnp.dtype(mxu_dtype).itemsize
                        + num_blocks * 128 * 4),
    )

    y_p, l2_parts = pl.pallas_call(
        kernel,
        out_shape=(
            jax.ShapeDtypeStruct((n, d_pad), x.dtype),
            jax.ShapeDtypeStruct((num_blocks, 1, 128), jnp.float32),
        ),
        grid_spec=pltpu.PrefetchScalarGridSpec(
            num_scalar_prefetch=0,
            grid=(num_blocks,),
            in_specs=[
                x_spec,                                              # x tile
                pl.BlockSpec((k * d_pad, d_pad), lambda i: (0, 0)),  # resident weights
            ],
            out_specs=(
                pl.BlockSpec((tile_n, d_pad), lambda i: (i, 0)),     # y tile
                pl.BlockSpec((1, 1, 128), lambda i: (i, 0, 0)),      # l2 partial
            ),
        ),
        compiler_params=pltpu.CompilerParams(
            dimension_semantics=("parallel",),
            vmem_limit_bytes=vmem_limit,
        ),
        cost_estimate=cost,
    )(x_p, w_fused)

    y = y_p[:, :d] if d != d_pad else y_p
    l2 = jnp.sum(l2_parts[:, 0, 0])
    return y, l2


def _reference(x, w_pos, w_neg, k):
    """Pure-JAX reference mirroring the torch forward exactly."""
    n, d = x.shape
    mus = jnp.array([2.0 / (2 * kk + 1) / math.pi for kk in range(k)], jnp.float32)
    bases = mus[None, None, :] * jnp.sin(x[:, :, None] / mus[None, None, :])
    bases = bases.reshape(n, d * k)
    hi = jax.lax.Precision.HIGHEST
    y = (jnp.dot(bases, w_pos.T, precision=hi)
         - jnp.dot(bases, w_neg.T, precision=hi))
    return y, jnp.sum(y ** 2) / n


if __name__ == "__main__":
    d, k, n = 8, 4, 16  # d variables, k expansions per variable, batch n

    key = jax.random.PRNGKey(0)
    kx, kp, kn, kx2 = jax.random.split(key, 4)
    x = jax.random.normal(kx, (n, d), dtype=jnp.float32)

    # The torch module zero-inits fc1_pos / fc1_neg (trivially zero output);
    # use small deterministic non-negative values instead so the kernel
    # exercises non-trivial compute.  Shapes match nn.Linear(d*k, d).weight.
    w_pos = 0.1 * jax.random.uniform(kp, (d, d * k), dtype=jnp.float32)
    w_neg = 0.1 * jax.random.uniform(kn, (d, d * k), dtype=jnp.float32)

    y_ref, l2_ref = _reference(x, w_pos, w_neg, k)

    # f32-MXU path: tight check of recurrence / weight fusion / l2 math.
    y32, l2_32 = notears_sobolev_forward(x, w_pos, w_neg, k, use_bf16_mxu=False)
    jax.block_until_ready((y32, l2_32))
    assert y32.shape == (n, d)
    assert jnp.allclose(y32, y_ref, rtol=1e-4, atol=1e-4)
    assert jnp.allclose(l2_32, l2_ref, rtol=1e-4, atol=1e-4)

    # Default bf16-MXU-operand path (f32 accumulation): looser tolerance.
    ybf, l2_bf = notears_sobolev_forward(x, w_pos, w_neg, k, use_bf16_mxu=True)
    jax.block_until_ready((ybf, l2_bf))
    assert jnp.allclose(ybf, y_ref, rtol=3e-2, atol=3e-2)
    assert jnp.allclose(l2_bf, l2_ref, rtol=5e-2, atol=1e-3)

    # Ragged batch: n not a multiple of the tile -> exercises the cdiv grid,
    # partial-block writeback, and the masked l2 reduction.
    n2 = 13
    x2 = jax.random.normal(kx2, (n2, d), dtype=jnp.float32)
    y2_ref, l22_ref = _reference(x2, w_pos, w_neg, k)
    y2, l22 = notears_sobolev_forward(x2, w_pos, w_neg, k,
                                      use_bf16_mxu=False, max_tile_n=8)
    jax.block_until_ready((y2, l22))
    assert y2.shape == (n2, d)
    assert jnp.allclose(y2, y2_ref, rtol=1e-4, atol=1e-4)
    assert jnp.allclose(l22, l22_ref, rtol=1e-4, atol=1e-4)

    print("KERNEL_OK")
</pallas_src>

<mosaic_0001>
module attributes {stable_mosaic.version = 11 : i64} {
  func.func @notears_sobolev_kernel(%arg0: i32, %arg1: memref<16x128xf32, #tpu.memory_space<vmem>>, %arg2: memref<512x128xf32, #tpu.memory_space<vmem>>, %arg3: memref<16x128xf32, #tpu.memory_space<vmem>>, %arg4: memref<1x1x128xf32, #tpu.memory_space<vmem>>) attributes {dimension_semantics = [#tpu.dimension_semantics<parallel>], iteration_bounds = array<i64: 1>, scalar_prefetch = 0 : i64, scratch_operands = 0 : i64, tpu.core_type = #tpu.core_type<tc>, window_params = [{transform_indices = @transform_0, window_bounds = array<i64: 16, 128>}, {pipeline_mode = #tpu.pipeline_mode<synchronous>, transform_indices = @transform_1, window_bounds = array<i64: 512, 128>}, {transform_indices = @transform_2, window_bounds = array<i64: 16, 128>}, {transform_indices = @transform_3, window_bounds = array<i64: 1, 1, 128>}]} {
    %c0 = arith.constant 0 : index
    %c0_0 = arith.constant 0 : index
    %0 = vector.load %arg1[%c0, %c0_0] : memref<16x128xf32, #tpu.memory_space<vmem>>, vector<16x128xf32>
    %cst = arith.constant 1.57079637 : f32
    %1 = vector.broadcast %cst : f32 to vector<16x128xf32>
    %2 = arith.mulf %0, %1 : vector<16x128xf32>
    %3 = math.sin %2 : vector<16x128xf32>
    %4 = arith.addf %2, %2 : vector<16x128xf32>
    %5 = math.cos %4 : vector<16x128xf32>
    %cst_1 = arith.constant 2.000000e+00 : f32
    %6 = vector.broadcast %cst_1 : f32 to vector<16x128xf32>
    %7 = arith.mulf %6, %5 : vector<16x128xf32>
    %cst_2 = arith.constant 0.000000e+00 : f32
    %8 = vector.broadcast %cst_2 : f32 to vector<16x128xf32>
    %9 = arith.subf %8, %3 : vector<16x128xf32>
    %cst_3 = arith.constant 0.636619746 : f32
    %10 = vector.broadcast %cst_3 : f32 to vector<16x128xf32>
    %11 = arith.mulf %10, %3 : vector<16x128xf32>
    %c0_4 = arith.constant 0 : index
    %c0_5 = arith.constant 0 : index
    %12 = vector.load %arg2[%c0_4, %c0_5] : memref<512x128xf32, #tpu.memory_space<vmem>>, vector<128x128xf32>
    %cst_6 = arith.constant dense<0.000000e+00> : vector<16x128xf32>
    %13 = tpu.matmul %11, %12, %cst_6 {dimension_numbers = #tpu.dot_dimension_numbers<[1], [0], [0], [1], [0, 0, 1, 1], [], []>} : vector<16x128xf32>, vector<128x128xf32>, vector<16x128xf32> -> vector<16x128xf32>
    %14 = arith.mulf %7, %3 : vector<16x128xf32>
    %15 = arith.subf %14, %9 : vector<16x128xf32>
    %cst_7 = arith.constant 0.212206587 : f32
    %16 = vector.broadcast %cst_7 : f32 to vector<16x128xf32>
    %17 = arith.mulf %16, %15 : vector<16x128xf32>
    %c128 = arith.constant 128 : index
    %c0_8 = arith.constant 0 : index
    %18 = vector.load %arg2[%c128, %c0_8] : memref<512x128xf32, #tpu.memory_space<vmem>>, vector<128x128xf32>
    %cst_9 = arith.constant dense<0.000000e+00> : vector<16x128xf32>
    %19 = tpu.matmul %17, %18, %cst_9 {dimension_numbers = #tpu.dot_dimension_numbers<[1], [0], [0], [1], [0, 0, 1, 1], [], []>} : vector<16x128xf32>, vector<128x128xf32>, vector<16x128xf32> -> vector<16x128xf32>
    %20 = arith.addf %13, %19 : vector<16x128xf32>
    %21 = arith.mulf %7, %15 : vector<16x128xf32>
    %22 = arith.subf %21, %3 : vector<16x128xf32>
    %cst_10 = arith.constant 0.127323955 : f32
    %23 = vector.broadcast %cst_10 : f32 to vector<16x128xf32>
    %24 = arith.mulf %23, %22 : vector<16x128xf32>
    %c256 = arith.constant 256 : index
    %c0_11 = arith.constant 0 : index
    %25 = vector.load %arg2[%c256, %c0_11] : memref<512x128xf32, #tpu.memory_space<vmem>>, vector<128x128xf32>
    %cst_12 = arith.constant dense<0.000000e+00> : vector<16x128xf32>
    %26 = tpu.matmul %24, %25, %cst_12 {dimension_numbers = #tpu.dot_dimension_numbers<[1], [0], [0], [1], [0, 0, 1, 1], [], []>} : vector<16x128xf32>, vector<128x128xf32>, vector<16x128xf32> -> vector<16x128xf32>
    %27 = arith.addf %20, %26 : vector<16x128xf32>
    %28 = arith.mulf %7, %22 : vector<16x128xf32>
    %29 = arith.subf %28, %15 : vector<16x128xf32>
    %cst_13 = arith.constant 0.0909456834 : f32
    %30 = vector.broadcast %cst_13 : f32 to vector<16x128xf32>
    %31 = arith.mulf %30, %29 : vector<16x128xf32>
    %c384 = arith.constant 384 : index
    %c0_14 = arith.constant 0 : index
    %32 = vector.load %arg2[%c384, %c0_14] : memref<512x128xf32, #tpu.memory_space<vmem>>, vector<128x128xf32>
    %cst_15 = arith.constant dense<0.000000e+00> : vector<16x128xf32>
    %33 = tpu.matmul %31, %32, %cst_15 {dimension_numbers = #tpu.dot_dimension_numbers<[1], [0], [0], [1], [0, 0, 1, 1], [], []>} : vector<16x128xf32>, vector<128x128xf32>, vector<16x128xf32> -> vector<16x128xf32>
    %34 = arith.addf %27, %33 : vector<16x128xf32>
    %c0_16 = arith.constant 0 : index
    %c0_17 = arith.constant 0 : index
    %35 = vector.load %arg3[%c0_16, %c0_17] : memref<16x128xf32, #tpu.memory_space<vmem>>, vector<16x128xf32>
    tpu.vector_store %arg3[%c0_16, %c0_17], %34 {strides = array<i32>} : memref<16x128xf32, #tpu.memory_space<vmem>>, vector<16x128xf32>,
    %c16_i32 = arith.constant 16 : i32
    %36 = arith.muli %arg0, %c16_i32 : i32
    %c16_i32_18 = arith.constant 16 : i32
    %37 = arith.subi %c16_i32_18, %36 : i32
    %38 = tpu.iota {dimensions = array<i32: 0>} : vector<16x128xi32>
    %39 = vector.broadcast %37 : i32 to vector<16x128xi32>
    %40 = arith.cmpi slt, %38, %39 : vector<16x128xi32>
    %41 = arith.mulf %34, %34 : vector<16x128xf32>
    %cst_19 = arith.constant 0.000000e+00 : f32
    %42 = vector.broadcast %cst_19 : f32 to vector<16x128xf32>
    %43 = arith.select %40, %41, %42 : vector<16x128xi1>, vector<16x128xf32>
    %44 = vector.shape_cast %43 : vector<16x128xf32> to vector<1x16x128xf32>
    %cst_20 = arith.constant dense<0.000000e+00> : vector<1xf32>
    %45 = vector.multi_reduction <add>, %44, %cst_20 [1, 2] : vector<1x16x128xf32> to vector<1xf32>
    %46 = vector.shape_cast %45 : vector<1xf32> to vector<1x1x1xf32>
    %47 = vector.extract %46[0, 0, 0] : f32 from vector<1x1x1xf32>
    %cst_21 = arith.constant 6.250000e-02 : f32
    %48 = arith.mulf %47, %cst_21 : f32
    %49 = vector.broadcast %48 : f32 to vector<1x1x128xf32>
    %c0_22 = arith.constant 0 : index
    %c0_23 = arith.constant 0 : index
    %c0_24 = arith.constant 0 : index
    %50 = vector.load %arg4[%c0_22, %c0_23, %c0_24] : memref<1x1x128xf32, #tpu.memory_space<vmem>>, vector<1x1x128xf32>
    tpu.vector_store %arg4[%c0_22, %c0_23, %c0_24], %49 {strides = array<i32>} : memref<1x1x128xf32, #tpu.memory_space<vmem>>, vector<1x1x128xf32>,
    return
  }
  func.func @transform_0(%arg0: i32) -> (i32, i32) {
    %c0_i32 = arith.constant 0 : i32
    %c0_i32_0 = arith.constant 0 : i32
    return %arg0, %c0_i32 : i32, i32
  }
  func.func @transform_1(%arg0: i32) -> (i32, i32) {
    %c0_i32 = arith.constant 0 : i32
    %c0_i32_0 = arith.constant 0 : i32
    %c0_i32_1 = arith.constant 0 : i32
    return %c0_i32, %c0_i32_0 : i32, i32
  }
  func.func @transform_2(%arg0: i32) -> (i32, i32) {
    %c0_i32 = arith.constant 0 : i32
    %c0_i32_0 = arith.constant 0 : i32
    return %arg0, %c0_i32 : i32, i32
  }
  func.func @transform_3(%arg0: i32) -> (i32, i32, i32) {
    %c0_i32 = arith.constant 0 : i32
    %c0_i32_0 = arith.constant 0 : i32
    %c0_i32_1 = arith.constant 0 : i32
    return %arg0, %c0_i32, %c0_i32_0 : i32, i32, i32
  }
}

</mosaic_0001>

<llo_original>
// kernel: tpu_custom_call.1
$region0: #{tpu_custom_call.1}
  #allocation0 [shape = 'u32[]', space=smem, size = 0x4, offset = 0x4, fixed_abs, tag = 'smem constant byte address 0x4 - core index']
  #allocation1 [shape = 'u32[144,128]{1,0:T(1,128)}', space=vmem, size = 0x12000, scoped, tag = 'internal scratch']
  %s0 = inlined_call_operand.hbm [shape: f32[16,128], index: 0, kind: input, shape index: {}]
  %s1 = inlined_call_operand.hbm [shape: f32[512,128], index: 1, kind: input, shape index: {}]
  %s2 = inlined_call_operand.hbm [shape: f32[16,128], index: 2, kind: output, shape index: {0}]
  %s3 = inlined_call_operand.hbm [shape: f32[1,1,128], index: 3, kind: output, shape index: {1}]
  %4 = xla_tuple %s2, %s3
  %s5 = sld [smem:[#allocation0]]
  $region34: #{tpu_custom_call.1} parent=0
    _
  %s7 = ssub.s32 1, %s5
  %s8 = scalar_select 0, %s7, %s5
  $region1: #{tpu_custom_call.1} parent=0
    #allocation2 [shape = 'u8[8192]{0}', space=vmem, size = 0x2000, scoped, tag = 'input window, operand 0, single buffered']
    #allocation3 [shape = 's32[1]{0}', space=sflag, size = 0x4, scoped, tag = 'scoped memory for tpu_custom_call.1']
    #allocation4 [shape = 's32[1]{0}', space=sflag, size = 0x4, scoped, tag = 'scoped memory for tpu_custom_call.1']
    #allocation5 [shape = 'u8[262144]{0}', space=vmem, size = 0x40000, scoped, tag = 'input window, operand 1, single buffered']
    #allocation6 [shape = 's32[1]{0}', space=sflag, size = 0x4, scoped, tag = 'scoped memory for tpu_custom_call.1']
    #allocation7 [shape = 'u8[8192]{0}', space=vmem, size = 0x2000, scoped, tag = 'output window, operand 0, single buffered']
    #allocation8 [shape = 'u8[512]{0}', space=vmem, size = 0x400, scoped, tag = 'output window, operand 1, single buffered']
    #allocation9 [shape = 's32[1]{0}', space=sflag, size = 0x4, scoped, tag = 'scoped memory for tpu_custom_call.1']
    %9 = vsyncpa [#allocation3], 0
    %10 = vsyncpa [#allocation6], 0
    %11 = vsyncpa [#allocation4], 0
    %12 = vsyncpa [#allocation9], 0
    // Predicated region
    $region2: #{tpu_custom_call.1} parent=1 // pred_check
      _
    $region3: #{tpu_custom_call.1} parent=1 // pred_check_branch
      %14 = sbr.rel (0) target = $region5
    $region4: #{tpu_custom_call.1} parent=1 // pred_region
      %s16 = ssub.s32 256, 256
      %17 = vsyncadd [#allocation3], %s16
      %s18 = sshll.u32 [#allocation2], 4
      %s19 = int_to_ptr.vmem [resolvable:$true] %s18
      %24 = dma.hbm_to_vmem [thread:$0]  %s0, 256, %s19, [#allocation3], 128, 128, 8
    $region5: #{tpu_custom_call.1} parent=1 // pred_fallthru
      _
    // Predicated region
    $region6: #{tpu_custom_call.1} parent=1 // pred_check
      _
    $region7: #{tpu_custom_call.1} parent=1 // pred_check_branch
      %26 = sbr.rel (0) target = $region9
    $region8: #{tpu_custom_call.1} parent=1 // pred_region
      %s28 = ssub.s32 8192, 8192
      %29 = vsyncadd [#allocation6], %s28
      %s30 = sshll.u32 [#allocation5], 4
      %s31 = int_to_ptr.vmem [resolvable:$true] %s30
      %36 = dma.hbm_to_vmem [thread:$0]  %s1, 8192, %s31, [#allocation6], 128, 128, 8
    $region9: #{tpu_custom_call.1} parent=1 // pred_fallthru
      _
    // Predicated region
    $region10: #{tpu_custom_call.1} parent=1 // pred_check
      _
    $region11: #{tpu_custom_call.1} parent=1 // pred_check_branch
      %38 = sbr.rel (0) target = $region13
    $region12: #{tpu_custom_call.1} parent=1 // pred_region
      %39 = dma.done [#allocation3], 256
    $region13: #{tpu_custom_call.1} parent=1 // pred_fallthru
      _
    // Predicated region
    $region14: #{tpu_custom_call.1} parent=1 // pred_check
      _
    $region15: #{tpu_custom_call.1} parent=1 // pred_check_branch
      %41 = sbr.rel (0) target = $region17
    $region16: #{tpu_custom_call.1} parent=1 // pred_region
      %42 = dma.done [#allocation6], 8192
    $region17: #{tpu_custom_call.1} parent=1 // pred_fallthru
      _
    %v43 = vld [vmem:[#allocation2] sm:$0xff]
    %v44 = vld [vmem:[#allocation2 + $0x8] sm:$0xff]
    %v45 = vmul.f32 %v43, 1.5707964
    %v46 = vmul.f32 %v44, 1.5707964
    %v47 = vand.u32 2147483647, %v45
    %vm48 = vcmp.le.f32.partialorder %v47, 0.7853982
    %vm49 = vcmp.lt.s32.totalorder %v45, 0
    %v50 = vand.u32 %v45, 2139095040
    %v51 = vshrl.u32 %v50, 23
    %v52 = vsub.s32 %v51, 127
    %v53 = vand.u32 2147483647, %v45
    %v54 = vand.u32 %v53, 8388607
    %v55 = vor.u32 %v54, 8388608
    %v56 = vsub.s32 0, %v55
    %v57 = vadd.s32 %v52, 1
    %vm58 = vcmp.gt.s32.totalorder %v57, 0
    %v59 = vsel %vm58, %v57, 0
    %v60 = vshrl.u32 %v59, 5
    %v61 = vand.u32 %v59, 31
    %v62 = vsub.s32 32, %v61
    %v63 = vshrl.u32 683565275, %v62
    %v64 = vshll.u32 683565275, %v61
    %v65 = vshrl.u32 2475754826, %v62
    %v66 = vor.u32 %v64, %v65
    %v67 = vshll.u32 2475754826, %v61
    %v68 = vshrl.u32 2131351028, %v62
    %v69 = vor.u32 %v67, %v68
    %v70 = vshll.u32 2131351028, %v61
    %v71 = vshrl.u32 2102212464, %v62
    %v72 = vor.u32 %v70, %v71
    %v73 = vshll.u32 2102212464, %v61
    %v74 = vshrl.u32 920167782, %v62
    %v75 = vor.u32 %v73, %v74
    %v76 = vshll.u32 920167782, %v61
    %v77 = vshrl.u32 1326507024, %v62
    %v78 = vor.u32 %v76, %v77
    %vm79 = vcmp.lt.s32.totalorder %v60, 1
    %vm80 = vcmp.lt.s32.totalorder %v60, 2
    %vm81 = vcmp.lt.s32.totalorder %v60, 3
    %vm82 = vcmp.lt.s32.totalorder %v60, 4
    %v83 = vsel %vm79, %v63, %v66
    %v84 = vsel %vm82, %v72, 2102212464
    %v85 = vsel %vm81, %v69, %v84
    %v86 = vsel %vm80, %v83, %v85
    %v87 = vsel %vm79, %v66, %v69
    %v88 = vsel %vm82, %v75, 920167782
    %v89 = vsel %vm81, %v72, %v88
    %v90 = vsel %vm80, %v87, %v89
    %v91 = vsel %vm79, %v69, %v72
    %v92 = vsel %vm82, %v78, 1326507024
    %v93 = vsel %vm81, %v75, %v92
    %v94 = vsel %vm80, %v91, %v93
    %v95 = vshll.u32 %v55, 8
    %v96 = vmul.u32.u64.compose %v95, %v94
    %v97 = vextract.low.u32 %v96
    %v98 = vextract.high.u32 %v96
    %v99 = vmul.u32.u64.compose %v95, %v90
    %v100 = vextract.low.u32 %v99
    %v101 = vextract.high.u32 %v99
    %v102 = vmul.u32 %v95, %v86
    %v103 = vadd.s32 %v98, %v100
    %vm104 = vc.u32 %v98, %v100
    %v105 = vadd.s32 %v101, 1
    %v106 = vsel %vm104, %v105, %v101
    %v107 = vadd.s32 %v102, %v106
    %v108 = vadd.s32 %v107, 536870912
    %v109 = vshrl.u32 %v108, 30
    %v110 = vshll.u32 %v109, 30
    %v111 = vsub.s32 %v107, %v110
    %vm112 = vcmp.lt.s32.totalorder %v111, 0
    %v113 = vsub.s32 0, %v111
    %v114 = vsel %vm112, %v113, %v111
    %v115 = vclz %v114
    %v116 = vsub.s32 %v115, 2
    %vm117 = vcmp.gt.s32.totalorder 0, %v116
    %v118 = vsel %vm117, 0, %v116
    %v119 = vsub.s32 32, %v118
    %v120 = vshll.u32 %v111, %v118
    %v121 = vshrl.u32 %v103, %v119
    %v122 = vor.u32 %v120, %v121
    %v123 = vsub.s32 4294967266, %v118
    %v124 = vadd.s32 %v123, 127
    %v125 = vshll.u32 %v124, 23
    %v126 = vor.u32 4788187, %v125
    %v127 = vand.u32 2147483647, %v126
    %v129 = vcvt.s32.f32 %v122
    %v130 = vmul.f32 %v129, %v127
    %v131 = vxor.u32 %v130, 2147483648
    %v132 = vsel %vm49, %v131, %v130
    %v133 = vsub.s32 4, %v109
    %v134 = vsel %vm49, %v133, %v109
    %v135 = vsel %vm48, %v45, %v132
    %v136 = vsel %vm48, 0, %v134
    %v137 = vcosq.f32.pop %v135
    %v138 = vsinq.f32.pop %v135
    %vm139 = vweird.f32 %v45
    %v140 = vadd.s32 %v136, 3
    %v141 = vand.u32 %v140, 3
    %vm142 = vcmp.lt.s32.totalorder %v141, 2
    %vm143 = vcmp.eq.s32.totalorder %v141, 0
    %v144 = vxor.u32 %v138, 2147483648
    %v145 = vsel %vm143, %v137, %v144
    %vm146 = vcmp.eq.s32.totalorder %v141, 2
    %v147 = vxor.u32 %v137, 2147483648
    %v148 = vsel %vm146, %v147, %v138
    %v149 = vsel %vm142, %v145, %v148
    %v150 = vsel %vm139, nan, %v149
    %v151 = vand.u32 2147483647, %v46
    %vm152 = vcmp.le.f32.partialorder %v151, 0.7853982
    %vm153 = vcmp.lt.s32.totalorder %v46, 0
    %v154 = vand.u32 %v46, 2139095040
    %v155 = vshrl.u32 %v154, 23
    %v156 = vsub.s32 %v155, 127
    %v157 = vand.u32 2147483647, %v46
    %v158 = vand.u32 %v157, 8388607
    %v159 = vor.u32 %v158, 8388608
    %v160 = vsub.s32 0, %v159
    %v161 = vadd.s32 %v156, 1
    %vm162 = vcmp.gt.s32.totalorder %v161, 0
    %v163 = vsel %vm162, %v161, 0
    %v164 = vshrl.u32 %v163, 5
    %v165 = vand.u32 %v163, 31
    %v166 = vsub.s32 32, %v165
    %v167 = vshrl.u32 683565275, %v166
    %v168 = vshll.u32 683565275, %v165
    %v169 = vshrl.u32 2475754826, %v166
    %v170 = vor.u32 %v168, %v169
    %v171 = vshll.u32 2475754826, %v165
    %v172 = vshrl.u32 2131351028, %v166
    %v173 = vor.u32 %v171, %v172
    %v174 = vshll.u32 2131351028, %v165
    %v175 = vshrl.u32 2102212464, %v166
    %v176 = vor.u32 %v174, %v175
    %v177 = vshll.u32 2102212464, %v165
    %v178 = vshrl.u32 920167782, %v166
    %v179 = vor.u32 %v177, %v178
    %v180 = vshll.u32 920167782, %v165
    %v181 = vshrl.u32 1326507024, %v166
    %v182 = vor.u32 %v180, %v181
    %vm183 = vcmp.lt.s32.totalorder %v164, 1
    %vm184 = vcmp.lt.s32.totalorder %v164, 2
    %vm185 = vcmp.lt.s32.totalorder %v164, 3
    %vm186 = vcmp.lt.s32.totalorder %v164, 4
    %v187 = vsel %vm183, %v167, %v170
    %v188 = vsel %vm186, %v176, 2102212464
    %v189 = vsel %vm185, %v173, %v188
    %v190 = vsel %vm184, %v187, %v189
    %v191 = vsel %vm183, %v170, %v173
    %v192 = vsel %vm186, %v179, 920167782
    %v193 = vsel %vm185, %v176, %v192
    %v194 = vsel %vm184, %v191, %v193
    %v195 = vsel %vm183, %v173, %v176
    %v196 = vsel %vm186, %v182, 1326507024
    %v197 = vsel %vm185, %v179, %v196
    %v198 = vsel %vm184, %v195, %v197
    %v199 = vshll.u32 %v159, 8
    %v200 = vmul.u32.u64.compose %v199, %v198
    %v201 = vextract.low.u32 %v200
    %v202 = vextract.high.u32 %v200
    %v203 = vmul.u32.u64.compose %v199, %v194
    %v204 = vextract.low.u32 %v203
    %v205 = vextract.high.u32 %v203
    %v206 = vmul.u32 %v199, %v190
    %v207 = vadd.s32 %v202, %v204
    %vm208 = vc.u32 %v202, %v204
    %v209 = vadd.s32 %v205, 1
    %v210 = vsel %vm208, %v209, %v205
    %v211 = vadd.s32 %v206, %v210
    %v212 = vadd.s32 %v211, 536870912
    %v213 = vshrl.u32 %v212, 30
    %v214 = vshll.u32 %v213, 30
    %v215 = vsub.s32 %v211, %v214
    %vm216 = vcmp.lt.s32.totalorder %v215, 0
    %v217 = vsub.s32 0, %v215
    %v218 = vsel %vm216, %v217, %v215
    %v219 = vclz %v218
    %v220 = vsub.s32 %v219, 2
    %vm221 = vcmp.gt.s32.totalorder 0, %v220
    %v222 = vsel %vm221, 0, %v220
    %v223 = vsub.s32 32, %v222
    %v224 = vshll.u32 %v215, %v222
    %v225 = vshrl.u32 %v207, %v223
    %v226 = vor.u32 %v224, %v225
    %v227 = vsub.s32 4294967266, %v222
    %v228 = vadd.s32 %v227, 127
    %v229 = vshll.u32 %v228, 23
    %v230 = vor.u32 4788187, %v229
    %v231 = vand.u32 2147483647, %v230
    %v233 = vcvt.s32.f32 %v226
    %v234 = vmul.f32 %v233, %v231
    %v235 = vxor.u32 %v234, 2147483648
    %v236 = vsel %vm153, %v235, %v234
    %v237 = vsub.s32 4, %v213
    %v238 = vsel %vm153, %v237, %v213
    %v239 = vsel %vm152, %v46, %v236
    %v240 = vsel %vm152, 0, %v238
    %v241 = vcosq.f32.pop %v239
    %v242 = vsinq.f32.pop %v239
    %vm243 = vweird.f32 %v46
    %v244 = vadd.s32 %v240, 3
    %v245 = vand.u32 %v244, 3
    %vm246 = vcmp.lt.s32.totalorder %v245, 2
    %vm247 = vcmp.eq.s32.totalorder %v245, 0
    %v248 = vxor.u32 %v242, 2147483648
    %v249 = vsel %vm247, %v241, %v248
    %vm250 = vcmp.eq.s32.totalorder %v245, 2
    %v251 = vxor.u32 %v241, 2147483648
    %v252 = vsel %vm250, %v251, %v242
    %v253 = vsel %vm246, %v249, %v252
    %v254 = vsel %vm243, nan, %v253
    %v255 = vadd.f32 %v45, %v45
    %v256 = vadd.f32 %v46, %v46
    %v257 = vand.u32 2147483647, %v255
    %vm258 = vcmp.le.f32.partialorder %v257, 0.7853982
    %vm259 = vcmp.lt.s32.totalorder %v255, 0
    %v260 = vand.u32 %v255, 2139095040
    %v261 = vshrl.u32 %v260, 23
    %v262 = vsub.s32 %v261, 127
    %v263 = vand.u32 2147483647, %v255
    %v264 = vand.u32 %v263, 8388607
    %v265 = vor.u32 %v264, 8388608
    %v266 = vsub.s32 0, %v265
    %v267 = vadd.s32 %v262, 1
    %vm268 = vcmp.gt.s32.totalorder %v267, 0
    %v269 = vsel %vm268, %v267, 0
    %v270 = vshrl.u32 %v269, 5
    %v271 = vand.u32 %v269, 31
    %v272 = vsub.s32 32, %v271
    %v273 = vshrl.u32 683565275, %v272
    %v274 = vshll.u32 683565275, %v271
    %v275 = vshrl.u32 2475754826, %v272
    %v276 = vor.u32 %v274, %v275
    %v277 = vshll.u32 2475754826, %v271
    %v278 = vshrl.u32 2131351028, %v272
    %v279 = vor.u32 %v277, %v278
    %v280 = vshll.u32 2131351028, %v271
    %v281 = vshrl.u32 2102212464, %v272
    %v282 = vor.u32 %v280, %v281
    %v283 = vshll.u32 2102212464, %v271
    %v284 = vshrl.u32 920167782, %v272
    %v285 = vor.u32 %v283, %v284
    %v286 = vshll.u32 920167782, %v271
    %v287 = vshrl.u32 1326507024, %v272
    %v288 = vor.u32 %v286, %v287
    %vm289 = vcmp.lt.s32.totalorder %v270, 1
    %vm290 = vcmp.lt.s32.totalorder %v270, 2
    %vm291 = vcmp.lt.s32.totalorder %v270, 3
    %vm292 = vcmp.lt.s32.totalorder %v270, 4
    %v293 = vsel %vm289, %v273, %v276
    %v294 = vsel %vm292, %v282, 2102212464
    %v295 = vsel %vm291, %v279, %v294
    %v296 = vsel %vm290, %v293, %v295
    %v297 = vsel %vm289, %v276, %v279
    %v298 = vsel %vm292, %v285, 920167782
    %v299 = vsel %vm291, %v282, %v298
    %v300 = vsel %vm290, %v297, %v299
    %v301 = vsel %vm289, %v279, %v282
    %v302 = vsel %vm292, %v288, 1326507024
    %v303 = vsel %vm291, %v285, %v302
    %v304 = vsel %vm290, %v301, %v303
    %v305 = vshll.u32 %v265, 8
    %v306 = vmul.u32.u64.compose %v305, %v304
    %v307 = vextract.low.u32 %v306
    %v308 = vextract.high.u32 %v306
    %v309 = vmul.u32.u64.compose %v305, %v300
    %v310 = vextract.low.u32 %v309
    %v311 = vextract.high.u32 %v309
    %v312 = vmul.u32 %v305, %v296
    %v313 = vadd.s32 %v308, %v310
    %vm314 = vc.u32 %v308, %v310
    %v315 = vadd.s32 %v311, 1
    %v316 = vsel %vm314, %v315, %v311
    %v317 = vadd.s32 %v312, %v316
    %v318 = vadd.s32 %v317, 536870912
    %v319 = vshrl.u32 %v318, 30
    %v320 = vshll.u32 %v319, 30
    %v321 = vsub.s32 %v317, %v320
    %vm322 = vcmp.lt.s32.totalorder %v321, 0
    %v323 = vsub.s32 0, %v321
    %v324 = vsel %vm322, %v323, %v321
    %v325 = vclz %v324
    %v326 = vsub.s32 %v325, 2
    %vm327 = vcmp.gt.s32.totalorder 0, %v326
    %v328 = vsel %vm327, 0, %v326
    %v329 = vsub.s32 32, %v328
    %v330 = vshll.u32 %v321, %v328
    %v331 = vshrl.u32 %v313, %v329
    %v332 = vor.u32 %v330, %v331
    %v333 = vsub.s32 4294967266, %v328
    %v334 = vadd.s32 %v333, 127
    %v335 = vshll.u32 %v334, 23
    %v336 = vor.u32 4788187, %v335
    %v337 = vand.u32 2147483647, %v336
    %v339 = vcvt.s32.f32 %v332
    %v340 = vmul.f32 %v339, %v337
    %v341 = vxor.u32 %v340, 2147483648
    %v342 = vsel %vm259, %v341, %v340
    %v343 = vsub.s32 4, %v319
    %v344 = vsel %vm259, %v343, %v319
    %v345 = vsel %vm258, %v255, %v342
    %v346 = vsel %vm258, 0, %v344
    %v347 = vcosq.f32.pop %v345
    %v348 = vsinq.f32.pop %v345
    %vm349 = vweird.f32 %v255
    %v350 = vand.u32 %v346, 3
    %vm351 = vcmp.lt.s32.totalorder %v350, 2
    %vm352 = vcmp.eq.s32.totalorder %v350, 0
    %v353 = vxor.u32 %v348, 2147483648
    %v354 = vsel %vm352, %v347, %v353
    %vm355 = vcmp.eq.s32.totalorder %v350, 2
    %v356 = vxor.u32 %v347, 2147483648
    %v357 = vsel %vm355, %v356, %v348
    %v358 = vsel %vm351, %v354, %v357
    %v359 = vsel %vm349, nan, %v358
    %v360 = vand.u32 2147483647, %v256
    %vm361 = vcmp.le.f32.partialorder %v360, 0.7853982
    %vm362 = vcmp.lt.s32.totalorder %v256, 0
    %v363 = vand.u32 %v256, 2139095040
    %v364 = vshrl.u32 %v363, 23
    %v365 = vsub.s32 %v364, 127
    %v366 = vand.u32 2147483647, %v256
    %v367 = vand.u32 %v366, 8388607
    %v368 = vor.u32 %v367, 8388608
    %v369 = vsub.s32 0, %v368
    %v370 = vadd.s32 %v365, 1
    %vm371 = vcmp.gt.s32.totalorder %v370, 0
    %v372 = vsel %vm371, %v370, 0
    %v373 = vshrl.u32 %v372, 5
    %v374 = vand.u32 %v372, 31
    %v375 = vsub.s32 32, %v374
    %v376 = vshrl.u32 683565275, %v375
    %v377 = vshll.u32 683565275, %v374
    %v378 = vshrl.u32 2475754826, %v375
    %v379 = vor.u32 %v377, %v378
    %v380 = vshll.u32 2475754826, %v374
    %v381 = vshrl.u32 2131351028, %v375
    %v382 = vor.u32 %v380, %v381
    %v383 = vshll.u32 2131351028, %v374
    %v384 = vshrl.u32 2102212464, %v375
    %v385 = vor.u32 %v383, %v384
    %v386 = vshll.u32 2102212464, %v374
    %v387 = vshrl.u32 920167782, %v375
    %v388 = vor.u32 %v386, %v387
    %v389 = vshll.u32 920167782, %v374
    %v390 = vshrl.u32 1326507024, %v375
    %v391 = vor.u32 %v389, %v390
    %vm392 = vcmp.lt.s32.totalorder %v373, 1
    %vm393 = vcmp.lt.s32.totalorder %v373, 2
    %vm394 = vcmp.lt.s32.totalorder %v373, 3
    %vm395 = vcmp.lt.s32.totalorder %v373, 4
    %v396 = vsel %vm392, %v376, %v379
    %v397 = vsel %vm395, %v385, 2102212464
    %v398 = vsel %vm394, %v382, %v397
    %v399 = vsel %vm393, %v396, %v398
    %v400 = vsel %vm392, %v379, %v382
    %v401 = vsel %vm395, %v388, 920167782
    %v402 = vsel %vm394, %v385, %v401
    %v403 = vsel %vm393, %v400, %v402
    %v404 = vsel %vm392, %v382, %v385
    %v405 = vsel %vm395, %v391, 1326507024
    %v406 = vsel %vm394, %v388, %v405
    %v407 = vsel %vm393, %v404, %v406
    %v408 = vshll.u32 %v368, 8
    %v409 = vmul.u32.u64.compose %v408, %v407
    %v410 = vextract.low.u32 %v409
    %v411 = vextract.high.u32 %v409
    %v412 = vmul.u32.u64.compose %v408, %v403
    %v413 = vextract.low.u32 %v412
    %v414 = vextract.high.u32 %v412
    %v415 = vmul.u32 %v408, %v399
    %v416 = vadd.s32 %v411, %v413
    %vm417 = vc.u32 %v411, %v413
    %v418 = vadd.s32 %v414, 1
    %v419 = vsel %vm417, %v418, %v414
    %v420 = vadd.s32 %v415, %v419
    %v421 = vadd.s32 %v420, 536870912
    %v422 = vshrl.u32 %v421, 30
    %v423 = vshll.u32 %v422, 30
    %v424 = vsub.s32 %v420, %v423
    %vm425 = vcmp.lt.s32.totalorder %v424, 0
    %v426 = vsub.s32 0, %v424
    %v427 = vsel %vm425, %v426, %v424
    %v428 = vclz %v427
    %v429 = vsub.s32 %v428, 2
    %vm430 = vcmp.gt.s32.totalorder 0, %v429
    %v431 = vsel %vm430, 0, %v429
    %v432 = vsub.s32 32, %v431
    %v433 = vshll.u32 %v424, %v431
    %v434 = vshrl.u32 %v416, %v432
    %v435 = vor.u32 %v433, %v434
    %v436 = vsub.s32 4294967266, %v431
    %v437 = vadd.s32 %v436, 127
    %v438 = vshll.u32 %v437, 23
    %v439 = vor.u32 4788187, %v438
    %v440 = vand.u32 2147483647, %v439
    %v442 = vcvt.s32.f32 %v435
    %v443 = vmul.f32 %v442, %v440
    %v444 = vxor.u32 %v443, 2147483648
    %v445 = vsel %vm362, %v444, %v443
    %v446 = vsub.s32 4, %v422
    %v447 = vsel %vm362, %v446, %v422
    %v448 = vsel %vm361, %v256, %v445
    %v449 = vsel %vm361, 0, %v447
    %v450 = vcosq.f32.pop %v448
    %v451 = vsinq.f32.pop %v448
    %vm452 = vweird.f32 %v256
    %v453 = vand.u32 %v449, 3
    %vm454 = vcmp.lt.s32.totalorder %v453, 2
    %vm455 = vcmp.eq.s32.totalorder %v453, 0
    %v456 = vxor.u32 %v451, 2147483648
    %v457 = vsel %vm455, %v450, %v456
    %vm458 = vcmp.eq.s32.totalorder %v453, 2
    %v459 = vxor.u32 %v450, 2147483648
    %v460 = vsel %vm458, %v459, %v451
    %v461 = vsel %vm454, %v457, %v460
    %v462 = vsel %vm452, nan, %v461
    %v463 = vmul.f32 %v359, 2.0
    %v464 = vmul.f32 %v462, 2.0
    %v465 = vsub.f32 0.0, %v150
    %v466 = vsub.f32 0.0, %v254
    %v467 = vmul.f32 %v150, 0.63661975
    %v468 = vmul.f32 %v254, 0.63661975
    %v469 = vld [vmem:[#allocation5] sm:$0xff]
    %v470 = vld [vmem:[#allocation5 + $0x8] sm:$0xff]
    %v471 = vld [vmem:[#allocation5 + $0x10] sm:$0xff]
    %v472 = vld [vmem:[#allocation5 + $0x18] sm:$0xff]
    %v473 = vld [vmem:[#allocation5 + $0x20] sm:$0xff]
    %v474 = vld [vmem:[#allocation5 + $0x28] sm:$0xff]
    %v475 = vld [vmem:[#allocation5 + $0x30] sm:$0xff]
    %v476 = vld [vmem:[#allocation5 + $0x38] sm:$0xff]
    %v477 = vld [vmem:[#allocation5 + $0x40] sm:$0xff]
    %v478 = vld [vmem:[#allocation5 + $0x48] sm:$0xff]
    %v479 = vld [vmem:[#allocation5 + $0x50] sm:$0xff]
    %v480 = vld [vmem:[#allocation5 + $0x58] sm:$0xff]
    %v481 = vld [vmem:[#allocation5 + $0x60] sm:$0xff]
    %v482 = vld [vmem:[#allocation5 + $0x68] sm:$0xff]
    %v483 = vld [vmem:[#allocation5 + $0x70] sm:$0xff]
    %v484 = vld [vmem:[#allocation5 + $0x78] sm:$0xff]
    %v485 = vmul.f32 %v463, %v150
    %v486 = vmul.f32 %v464, %v254
    %v487 = vsub.f32 %v485, %v465
    %v488 = vsub.f32 %v486, %v466
    %v489 = vmul.f32 %v487, 0.21220659
    %v490 = vmul.f32 %v488, 0.21220659
    %v491 = vld [vmem:[#allocation5 + $0x80] sm:$0xff]
    %v492 = vld [vmem:[#allocation5 + $0x88] sm:$0xff]
    %v493 = vld [vmem:[#allocation5 + $0x90] sm:$0xff]
    %v494 = vld [vmem:[#allocation5 + $0x98] sm:$0xff]
    %v495 = vld [vmem:[#allocation5 + $0xa0] sm:$0xff]
    %v496 = vld [vmem:[#allocation5 + $0xa8] sm:$0xff]
    %v497 = vld [vmem:[#allocation5 + $0xb0] sm:$0xff]
    %v498 = vld [vmem:[#allocation5 + $0xb8] sm:$0xff]
    %v499 = vld [vmem:[#allocation5 + $0xc0] sm:$0xff]
    %v500 = vld [vmem:[#allocation5 + $0xc8] sm:$0xff]
    %v501 = vld [vmem:[#allocation5 + $0xd0] sm:$0xff]
    %v502 = vld [vmem:[#allocation5 + $0xd8] sm:$0xff]
    %v503 = vld [vmem:[#allocation5 + $0xe0] sm:$0xff]
    %v504 = vld [vmem:[#allocation5 + $0xe8] sm:$0xff]
    %v505 = vld [vmem:[#allocation5 + $0xf0] sm:$0xff]
    %v506 = vld [vmem:[#allocation5 + $0xf8] sm:$0xff]
    %507 = vmatprep.subr.mxu0 0.0
    %508 = vmatpush1.msra.mxu0 %v491
    %509 = vmatprep.subr.mxu0 0.0
    %510 = vmatpush1.msra.mxu0 %v492
    %511 = vmatprep.subr.mxu0 0.0
    %512 = vmatpush1.msra.mxu0 %v493
    %513 = vmatprep.subr.mxu0 0.0
    %514 = vmatpush1.msra.mxu0 %v494
    %515 = vmatprep.subr.mxu0 0.0
    %516 = vmatpush1.msra.mxu0 %v495
    %517 = vmatprep.subr.mxu0 0.0
    %518 = vmatpush1.msra.mxu0 %v496
    %519 = vmatprep.subr.mxu0 0.0
    %520 = vmatpush1.msra.mxu0 %v497
    %521 = vmatprep.subr.mxu0 0.0
    %522 = vmatpush1.msra.mxu0 %v498
    %523 = vmatprep.subr.mxu0 0.0
    %524 = vmatpush1.msra.mxu0 %v499
    %525 = vmatprep.subr.mxu0 0.0
    %526 = vmatpush1.msra.mxu0 %v500
    %527 = vmatprep.subr.mxu0 0.0
    %528 = vmatpush1.msra.mxu0 %v501
    %529 = vmatprep.subr.mxu0 0.0
    %530 = vmatpush1.msra.mxu0 %v502
    %531 = vmatprep.subr.mxu0 0.0
    %532 = vmatpush1.msra.mxu0 %v503
    %533 = vmatprep.subr.mxu0 0.0
    %534 = vmatpush1.msra.mxu0 %v504
    %535 = vmatprep.subr.mxu0 0.0
    %536 = vmatpush1.msra.mxu0 %v505
    %537 = vmatprep.subr.mxu0 0.0
    %538 = vmatpush1.msra.mxu0 %v506
    %539 = vmatprep.subr.mxu0 0.0
    %540 = vmatpush1.msra.mxu0 0.0
    %541 = vmatprep.subr.mxu0 0.0
    %542 = vmatpush1.msra.mxu0 0.0
    %543 = vmatprep.subr.mxu0 0.0
    %544 = vmatpush1.msra.mxu0 0.0
    %545 = vmatprep.subr.mxu0 0.0
    %546 = vmatpush1.msra.mxu0 0.0
    %547 = vmatprep.subr.mxu0 0.0
    %548 = vmatpush1.msra.mxu0 0.0
    %549 = vmatprep.subr.mxu0 0.0
    %550 = vmatpush1.msra.mxu0 0.0
    %551 = vmatprep.subr.mxu0 0.0
    %552 = vmatpush1.msra.mxu0 0.0
    %553 = vmatprep.subr.mxu0 0.0
    %554 = vmatpush1.msra.mxu0 0.0
    %555 = vmatprep.subr.mxu0 0.0
    %556 = vmatpush1.msra.mxu0 0.0
    %557 = vmatprep.subr.mxu0 0.0
    %558 = vmatpush1.msra.mxu0 0.0
    %559 = vmatprep.subr.mxu0 0.0
    %560 = vmatpush1.msra.mxu0 0.0
    %561 = vmatprep.subr.mxu0 0.0
    %562 = vmatpush1.msra.mxu0 0.0
    %563 = vmatprep.subr.mxu0 0.0
    %564 = vmatpush1.msra.mxu0 0.0
    %565 = vmatprep.subr.mxu0 0.0
    %566 = vmatpush1.msra.mxu0 0.0
    %567 = vmatprep.subr.mxu0 0.0
    %568 = vmatpush1.msra.mxu0 0.0
    %569 = vmatprep.subr.mxu0 0.0
    %570 = vmatpush1.msra.mxu0 0.0
    %571 = vmatprep.mubr.f32.mxu0 0.0
    %572 = vmatmul.mubr.f32.gmra.mrb[0].mxu0 %v489
    %v573 = vpop.f32.mrb[0].mxu0
    %v574 = vadd.f32 0.0, %v573
    %v575 = vpop.f32.mrb[0].mxu0
    %576 = vmatprep.mubr.f32.mxu0 0.0
    %577 = vmatmul.mubr.f32.gmra.mrb[0].mxu0 %v490
    %v578 = vpop.f32.mrb[0].mxu0
    %v579 = vadd.f32 0.0, %v578
    %v580 = vpop.f32.mrb[0].mxu0
    %581 = vdwg.mxu0
    %582 = vmatprep.subr.mxu0 0.0
    %583 = vmatpush1.msra.mxu0 %v469
    %584 = vmatprep.subr.mxu0 0.0
    %585 = vmatpush1.msra.mxu0 %v470
    %586 = vmatprep.subr.mxu0 0.0
    %587 = vmatpush1.msra.mxu0 %v471
    %588 = vmatprep.subr.mxu0 0.0
    %589 = vmatpush1.msra.mxu0 %v472
    %590 = vmatprep.subr.mxu0 0.0
    %591 = vmatpush1.msra.mxu0 %v473
    %592 = vmatprep.subr.mxu0 0.0
    %593 = vmatpush1.msra.mxu0 %v474
    %594 = vmatprep.subr.mxu0 0.0
    %595 = vmatpush1.msra.mxu0 %v475
    %596 = vmatprep.subr.mxu0 0.0
    %597 = vmatpush1.msra.mxu0 %v476
    %598 = vmatprep.subr.mxu0 0.0
    %599 = vmatpush1.msra.mxu0 %v477
    %600 = vmatprep.subr.mxu0 0.0
    %601 = vmatpush1.msra.mxu0 %v478
    %602 = vmatprep.subr.mxu0 0.0
    %603 = vmatpush1.msra.mxu0 %v479
    %604 = vmatprep.subr.mxu0 0.0
    %605 = vmatpush1.msra.mxu0 %v480
    %606 = vmatprep.subr.mxu0 0.0
    %607 = vmatpush1.msra.mxu0 %v481
    %608 = vmatprep.subr.mxu0 0.0
    %609 = vmatpush1.msra.mxu0 %v482
    %610 = vmatprep.subr.mxu0 0.0
    %611 = vmatpush1.msra.mxu0 %v483
    %612 = vmatprep.subr.mxu0 0.0
    %613 = vmatpush1.msra.mxu0 %v484
    %614 = vmatprep.subr.mxu0 0.0
    %615 = vmatpush1.msra.mxu0 0.0
    %616 = vmatprep.subr.mxu0 0.0
    %617 = vmatpush1.msra.mxu0 0.0
    %618 = vmatprep.subr.mxu0 0.0
    %619 = vmatpush1.msra.mxu0 0.0
    %620 = vmatprep.subr.mxu0 0.0
    %621 = vmatpush1.msra.mxu0 0.0
    %622 = vmatprep.subr.mxu0 0.0
    %623 = vmatpush1.msra.mxu0 0.0
    %624 = vmatprep.subr.mxu0 0.0
    %625 = vmatpush1.msra.mxu0 0.0
    %626 = vmatprep.subr.mxu0 0.0
    %627 = vmatpush1.msra.mxu0 0.0
    %628 = vmatprep.subr.mxu0 0.0
    %629 = vmatpush1.msra.mxu0 0.0
    %630 = vmatprep.subr.mxu0 0.0
    %631 = vmatpush1.msra.mxu0 0.0
    %632 = vmatprep.subr.mxu0 0.0
    %633 = vmatpush1.msra.mxu0 0.0
    %634 = vmatprep.subr.mxu0 0.0
    %635 = vmatpush1.msra.mxu0 0.0
    %636 = vmatprep.subr.mxu0 0.0
    %637 = vmatpush1.msra.mxu0 0.0
    %638 = vmatprep.subr.mxu0 0.0
    %639 = vmatpush1.msra.mxu0 0.0
    %640 = vmatprep.subr.mxu0 0.0
    %641 = vmatpush1.msra.mxu0 0.0
    %642 = vmatprep.subr.mxu0 0.0
    %643 = vmatpush1.msra.mxu0 0.0
    %644 = vmatprep.subr.mxu0 0.0
    %645 = vmatpush1.msra.mxu0 0.0
    %646 = vmatprep.mubr.f32.mxu0 0.0
    %647 = vmatmul.mubr.f32.gmra.mrb[0].mxu0 %v467
    %v648 = vpop.f32.mrb[0].mxu0
    %v649 = vadd.f32 %v574, %v648
    %v650 = vpop.f32.mrb[0].mxu0
    %651 = vmatprep.mubr.f32.mxu0 0.0
    %652 = vmatmul.mubr.f32.gmra.mrb[0].mxu0 %v468
    %v653 = vpop.f32.mrb[0].mxu0
    %v654 = vadd.f32 %v579, %v653
    %v655 = vpop.f32.mrb[0].mxu0
    %656 = vdwg.mxu0
    %v657 = vmul.f32 %v463, %v487
    %v658 = vmul.f32 %v464, %v488
    %v659 = vsub.f32 %v657, %v150
    %v660 = vsub.f32 %v658, %v254
    %v661 = vmul.f32 %v659, 0.12732396
    %v662 = vmul.f32 %v660, 0.12732396
    %v663 = vld [vmem:[#allocation5 + $0x100] sm:$0xff]
    %v664 = vld [vmem:[#allocation5 + $0x108] sm:$0xff]
    %v665 = vld [vmem:[#allocation5 + $0x110] sm:$0xff]
    %v666 = vld [vmem:[#allocation5 + $0x118] sm:$0xff]
    %v667 = vld [vmem:[#allocation5 + $0x120] sm:$0xff]
    %v668 = vld [vmem:[#allocation5 + $0x128] sm:$0xff]
    %v669 = vld [vmem:[#allocation5 + $0x130] sm:$0xff]
    %v670 = vld [vmem:[#allocation5 + $0x138] sm:$0xff]
    %v671 = vld [vmem:[#allocation5 + $0x140] sm:$0xff]
    %v672 = vld [vmem:[#allocation5 + $0x148] sm:$0xff]
    %v673 = vld [vmem:[#allocation5 + $0x150] sm:$0xff]
    %v674 = vld [vmem:[#allocation5 + $0x158] sm:$0xff]
    %v675 = vld [vmem:[#allocation5 + $0x160] sm:$0xff]
    %v676 = vld [vmem:[#allocation5 + $0x168] sm:$0xff]
    %v677 = vld [vmem:[#allocation5 + $0x170] sm:$0xff]
    %v678 = vld [vmem:[#allocation5 + $0x178] sm:$0xff]
    %679 = vmatprep.subr.mxu0 0.0
    %680 = vmatpush1.msra.mxu0 %v663
    %681 = vmatprep.subr.mxu0 0.0
    %682 = vmatpush1.msra.mxu0 %v664
    %683 = vmatprep.subr.mxu0 0.0
    %684 = vmatpush1.msra.mxu0 %v665
    %685 = vmatprep.subr.mxu0 0.0
    %686 = vmatpush1.msra.mxu0 %v666
    %687 = vmatprep.subr.mxu0 0.0
    %688 = vmatpush1.msra.mxu0 %v667
    %689 = vmatprep.subr.mxu0 0.0
    %690 = vmatpush1.msra.mxu0 %v668
    %691 = vmatprep.subr.mxu0 0.0
    %692 = vmatpush1.msra.mxu0 %v669
    %693 = vmatprep.subr.mxu0 0.0
    %694 = vmatpush1.msra.mxu0 %v670
    %695 = vmatprep.subr.mxu0 0.0
    %696 = vmatpush1.msra.mxu0 %v671
    %697 = vmatprep.subr.mxu0 0.0
    %698 = vmatpush1.msra.mxu0 %v672
    %699 = vmatprep.subr.mxu0 0.0
    %700 = vmatpush1.msra.mxu0 %v673
    %701 = vmatprep.subr.mxu0 0.0
    %702 = vmatpush1.msra.mxu0 %v674
    %703 = vmatprep.subr.mxu0 0.0
    %704 = vmatpush1.msra.mxu0 %v675
    %705 = vmatprep.subr.mxu0 0.0
    %706 = vmatpush1.msra.mxu0 %v676
    %707 = vmatprep.subr.mxu0 0.0
    %708 = vmatpush1.msra.mxu0 %v677
    %709 = vmatprep.subr.mxu0 0.0
    %710 = vmatpush1.msra.mxu0 %v678
    %711 = vmatprep.subr.mxu0 0.0
    %712 = vmatpush1.msra.mxu0 0.0
    %713 = vmatprep.subr.mxu0 0.0
    %714 = vmatpush1.msra.mxu0 0.0
    %715 = vmatprep.subr.mxu0 0.0
    %716 = vmatpush1.msra.mxu0 0.0
    %717 = vmatprep.subr.mxu0 0.0
    %718 = vmatpush1.msra.mxu0 0.0
    %719 = vmatprep.subr.mxu0 0.0
    %720 = vmatpush1.msra.mxu0 0.0
    %721 = vmatprep.subr.mxu0 0.0
    %722 = vmatpush1.msra.mxu0 0.0
    %723 = vmatprep.subr.mxu0 0.0
    %724 = vmatpush1.msra.mxu0 0.0
    %725 = vmatprep.subr.mxu0 0.0
    %726 = vmatpush1.msra.mxu0 0.0
    %727 = vmatprep.subr.mxu0 0.0
    %728 = vmatpush1.msra.mxu0 0.0
    %729 = vmatprep.subr.mxu0 0.0
    %730 = vmatpush1.msra.mxu0 0.0
    %731 = vmatprep.subr.mxu0 0.0
    %732 = vmatpush1.msra.mxu0 0.0
    %733 = vmatprep.subr.mxu0 0.0
    %734 = vmatpush1.msra.mxu0 0.0
    %735 = vmatprep.subr.mxu0 0.0
    %736 = vmatpush1.msra.mxu0 0.0
    %737 = vmatprep.subr.mxu0 0.0
    %738 = vmatpush1.msra.mxu0 0.0
    %739 = vmatprep.subr.mxu0 0.0
    %740 = vmatpush1.msra.mxu0 0.0
    %741 = vmatprep.subr.mxu0 0.0
    %742 = vmatpush1.msra.mxu0 0.0
    %743 = vmatprep.mubr.f32.mxu0 0.0
    %744 = vmatmul.mubr.f32.gmra.mrb[0].mxu0 %v661
    %v745 = vpop.f32.mrb[0].mxu0
    %v746 = vadd.f32 0.0, %v745
    %v747 = vpop.f32.mrb[0].mxu0
    %748 = vmatprep.mubr.f32.mxu0 0.0
    %749 = vmatmul.mubr.f32.gmra.mrb[0].mxu0 %v662
    %v750 = vpop.f32.mrb[0].mxu0
    %v751 = vadd.f32 0.0, %v750
    %v752 = vpop.f32.mrb[0].mxu0
    %753 = vdwg.mxu0
    %v754 = vadd.f32 %v649, %v746
    %v755 = vadd.f32 %v654, %v751
    %v756 = vmul.f32 %v463, %v659
    %v757 = vmul.f32 %v464, %v660
    %v758 = vsub.f32 %v756, %v487
    %v759 = vsub.f32 %v757, %v488
    %v760 = vmul.f32 %v758, 0.09094568
    %v761 = vmul.f32 %v759, 0.09094568
    %v762 = vld [vmem:[#allocation5 + $0x180] sm:$0xff]
    %v763 = vld [vmem:[#allocation5 + $0x188] sm:$0xff]
    %v764 = vld [vmem:[#allocation5 + $0x190] sm:$0xff]
    %v765 = vld [vmem:[#allocation5 + $0x198] sm:$0xff]
    %v766 = vld [vmem:[#allocation5 + $0x1a0] sm:$0xff]
    %v767 = vld [vmem:[#allocation5 + $0x1a8] sm:$0xff]
    %v768 = vld [vmem:[#allocation5 + $0x1b0] sm:$0xff]
    %v769 = vld [vmem:[#allocation5 + $0x1b8] sm:$0xff]
    %v770 = vld [vmem:[#allocation5 + $0x1c0] sm:$0xff]
    %v771 = vld [vmem:[#allocation5 + $0x1c8] sm:$0xff]
    %v772 = vld [vmem:[#allocation5 + $0x1d0] sm:$0xff]
    %v773 = vld [vmem:[#allocation5 + $0x1d8] sm:$0xff]
    %v774 = vld [vmem:[#allocation5 + $0x1e0] sm:$0xff]
    %v775 = vld [vmem:[#allocation5 + $0x1e8] sm:$0xff]
    %v776 = vld [vmem:[#allocation5 + $0x1f0] sm:$0xff]
    %v777 = vld [vmem:[#allocation5 + $0x1f8] sm:$0xff]
    %778 = vmatprep.subr.mxu0 0.0
    %779 = vmatpush1.msra.mxu0 %v762
    %780 = vmatprep.subr.mxu0 0.0
    %781 = vmatpush1.msra.mxu0 %v763
    %782 = vmatprep.subr.mxu0 0.0
    %783 = vmatpush1.msra.mxu0 %v764
    %784 = vmatprep.subr.mxu0 0.0
    %785 = vmatpush1.msra.mxu0 %v765
    %786 = vmatprep.subr.mxu0 0.0
    %787 = vmatpush1.msra.mxu0 %v766
    %788 = vmatprep.subr.mxu0 0.0
    %789 = vmatpush1.msra.mxu0 %v767
    %790 = vmatprep.subr.mxu0 0.0
    %791 = vmatpush1.msra.mxu0 %v768
    %792 = vmatprep.subr.mxu0 0.0
    %793 = vmatpush1.msra.mxu0 %v769
    %794 = vmatprep.subr.mxu0 0.0
    %795 = vmatpush1.msra.mxu0 %v770
    %796 = vmatprep.subr.mxu0 0.0
    %797 = vmatpush1.msra.mxu0 %v771
    %798 = vmatprep.subr.mxu0 0.0
    %799 = vmatpush1.msra.mxu0 %v772
    %800 = vmatprep.subr.mxu0 0.0
    %801 = vmatpush1.msra.mxu0 %v773
    %802 = vmatprep.subr.mxu0 0.0
    %803 = vmatpush1.msra.mxu0 %v774
    %804 = vmatprep.subr.mxu0 0.0
    %805 = vmatpush1.msra.mxu0 %v775
    %806 = vmatprep.subr.mxu0 0.0
    %807 = vmatpush1.msra.mxu0 %v776
    %808 = vmatprep.subr.mxu0 0.0
    %809 = vmatpush1.msra.mxu0 %v777
    %810 = vmatprep.subr.mxu0 0.0
    %811 = vmatpush1.msra.mxu0 0.0
    %812 = vmatprep.subr.mxu0 0.0
    %813 = vmatpush1.msra.mxu0 0.0
    %814 = vmatprep.subr.mxu0 0.0
    %815 = vmatpush1.msra.mxu0 0.0
    %816 = vmatprep.subr.mxu0 0.0
    %817 = vmatpush1.msra.mxu0 0.0
    %818 = vmatprep.subr.mxu0 0.0
    %819 = vmatpush1.msra.mxu0 0.0
    %820 = vmatprep.subr.mxu0 0.0
    %821 = vmatpush1.msra.mxu0 0.0
    %822 = vmatprep.subr.mxu0 0.0
    %823 = vmatpush1.msra.mxu0 0.0
    %824 = vmatprep.subr.mxu0 0.0
    %825 = vmatpush1.msra.mxu0 0.0
    %826 = vmatprep.subr.mxu0 0.0
    %827 = vmatpush1.msra.mxu0 0.0
    %828 = vmatprep.subr.mxu0 0.0
    %829 = vmatpush1.msra.mxu0 0.0
    %830 = vmatprep.subr.mxu0 0.0
    %831 = vmatpush1.msra.mxu0 0.0
    %832 = vmatprep.subr.mxu0 0.0
    %833 = vmatpush1.msra.mxu0 0.0
    %834 = vmatprep.subr.mxu0 0.0
    %835 = vmatpush1.msra.mxu0 0.0
    %836 = vmatprep.subr.mxu0 0.0
    %837 = vmatpush1.msra.mxu0 0.0
    %838 = vmatprep.subr.mxu0 0.0
    %839 = vmatpush1.msra.mxu0 0.0
    %840 = vmatprep.subr.mxu0 0.0
    %841 = vmatpush1.msra.mxu0 0.0
    %842 = vmatprep.mubr.f32.mxu0 0.0
    %843 = vmatmul.mubr.f32.gmra.mrb[0].mxu0 %v760
    %v844 = vpop.f32.mrb[0].mxu0
    %v845 = vadd.f32 0.0, %v844
    %v846 = vpop.f32.mrb[0].mxu0
    %847 = vmatprep.mubr.f32.mxu0 0.0
    %848 = vmatmul.mubr.f32.gmra.mrb[0].mxu0 %v761
    %v849 = vpop.f32.mrb[0].mxu0
    %v850 = vadd.f32 0.0, %v849
    %v851 = vpop.f32.mrb[0].mxu0
    %852 = vdwg.mxu0
    %v853 = vadd.f32 %v754, %v845
    %v854 = vadd.f32 %v755, %v850
    %855 = vst [vmem:[#allocation7] sm:$0xff] %v853
    %856 = vst [vmem:[#allocation7 + $0x8] sm:$0xff] %v854
    %s857 = smul.u32 0, 16
    %s858 = ssub.s32 16, %s857
    %v859 = vlaneseq
    %v860 = vshrl.u32 %v859, 7
    %v861 = vadd.s32 %v860, 8
    %v862 = vstv %s858
    %vm863 = vcmp.lt.s32.totalorder %v860, %v862
    %vm864 = vcmp.lt.s32.totalorder %v861, %v862
    %v865 = vmul.f32 %v853, %v853
    %v866 = vmul.f32 %v854, %v854
    %v867 = vsel %vm863, %v865, 0.0
    %v868 = vsel %vm864, %v866, 0.0
    %v869 = vadd.f32 %v867, %v868
    %870 = vadd.xlane.f32.xlu0 %v869
    %v871 = vpop.xlane.xlu0 %870
    %v872 = vrot.slane %v871, 4
    %v873 = vadd.f32 %v871, %v872
    %v874 = vrot.slane %v873, 2
    %v875 = vadd.f32 %v873, %v874
    %v876 = vrot.slane %v875, 1
    %v877 = vadd.f32 %v875, %v876
    %s878 = vtos %v877
    %s879 = smul.f32 %s878, 0.0625
    %v880 = vstv %s879
    %881 = vst [vmem:[#allocation8] sm:$0x1] %v880
    // Predicated region
    $region18: #{tpu_custom_call.1} parent=1 // pred_check
      _
    $region19: #{tpu_custom_call.1} parent=1 // pred_check_branch
      %883 = sbr.rel (0) target = $region21
    $region20: #{tpu_custom_call.1} parent=1 // pred_region
      %s885 = ssub.s32 256, 256
      %886 = vsyncadd [#allocation4], %s885
      %s887 = sshll.u32 [#allocation7], 4
      %s888 = int_to_ptr.vmem [resolvable:$true] %s887
      %893 = dma.vmem_to_hbm [thread:$0]  %s888, 256, %s2, [#allocation4], 128, 128, 8
    $region21: #{tpu_custom_call.1} parent=1 // pred_fallthru
      _
    // Predicated region
    $region22: #{tpu_custom_call.1} parent=1 // pred_check
      _
    $region23: #{tpu_custom_call.1} parent=1 // pred_check_branch
      %895 = sbr.rel (0) target = $region25
    $region24: #{tpu_custom_call.1} parent=1 // pred_region
      %s897 = ssub.s32 16, 16
      %898 = vsyncadd [#allocation9], %s897
      %s900 = sshll.u32 [#allocation8], 4
      %s901 = int_to_ptr.vmem [resolvable:$true] %s900
      %903 = dma.vmem_to_hbm [thread:$0]  %s901, 16, %s3, [#allocation9]
    $region25: #{tpu_custom_call.1} parent=1 // pred_fallthru
      _
    // Predicated region
    $region26: #{tpu_custom_call.1} parent=1 // pred_check
      _
    $region27: #{tpu_custom_call.1} parent=1 // pred_check_branch
      %905 = sbr.rel (0) target = $region29
    $region28: #{tpu_custom_call.1} parent=1 // pred_region
      %906 = dma.done [#allocation4], 256
    $region29: #{tpu_custom_call.1} parent=1 // pred_fallthru
      _
    // Predicated region
    $region30: #{tpu_custom_call.1} parent=1 // pred_check
      _
    $region31: #{tpu_custom_call.1} parent=1 // pred_check_branch
      %908 = sbr.rel (0) target = $region33
    $region32: #{tpu_custom_call.1} parent=1 // pred_region
      %909 = dma.done [#allocation9], 16
    $region33: #{tpu_custom_call.1} parent=1 // pred_fallthru
      _
    %910 = vsyncpa [#allocation3], 1
    %911 = vsyncpa [#allocation6], 1
    %912 = vsyncpa [#allocation4], 1
    %913 = vsyncpa [#allocation9], 1

</llo_original>
